<compile_context>
chip_gen: v5e
topology: v5e:2x2
jax: 0.10.0
libtpu: 0.0.40
codegen_flags: <defaults>
</compile_context>

<pallas_src>
import functools

import jax
import jax.numpy as jnp
from jax.experimental import pallas as pl
from jax.experimental.pallas import tpu as pltpu

_HID = 128        # hidden width padded 64 -> 128 (full vreg lane width)
_LANE = 128       # output width padded n_actions -> 128 (lane-dense stores)
_MAX_TILE = 1024  # batch rows per grid step (kernel is grid-overhead bound)


def _round_up(a, m):
    return (a + m - 1) // m * m


def _pick_n_sub(tb):
    # Independent sub-blocks of ~128-256 rows inside a tile; guarantees
    # tb % n_sub == 0 and sub-block row counts that are multiples of 8.
    for ts in (256, 128):
        if tb % ts == 0 and tb > ts:
            return tb // ts
    return 1


def dqn_kernel(x_ref, w1_ref, b1_ref, w2_ref, b2_ref, w3_ref, b3_ref, o_ref,
               *, n_sub):
    # Weights are small, bf16 and grid-resident (index_map always (0, 0)).
    w1, w2, w3 = w1_ref[...], w2_ref[...], w3_ref[...]

    tb = x_ref.shape[0]
    ts = tb // n_sub

    # Bias broadcasts hoisted out of the unrolled sub-block loop.
    b1 = jnp.broadcast_to(b1_ref[...], (ts, w1.shape[1]))
    b2 = jnp.broadcast_to(b2_ref[...], (ts, w2.shape[1]))
    b3 = jnp.broadcast_to(b3_ref[...], (ts, w3.shape[1]))

    # Static (unrolled) loop over independent sub-blocks of the batch tile:
    # lets the LLO scheduler interleave MXU work of one sub-block with the
    # EUP tanh of another.
    for s in range(n_sub):
        rows = pl.ds(s * ts, ts)
        x = x_ref[rows, :].astype(jnp.bfloat16)
        # bf16 MXU matmuls with f32 accumulation; bias-add + tanh stay f32.
        h1 = jnp.tanh(jnp.dot(x, w1, preferred_element_type=jnp.float32) + b1)
        h2 = jnp.tanh(
            jnp.dot(h1.astype(jnp.bfloat16), w2,
                    preferred_element_type=jnp.float32) + b2)
        o_ref[rows, :] = (
            jnp.dot(h2.astype(jnp.bfloat16), w3,
                    preferred_element_type=jnp.float32) + b3
        ).astype(o_ref.dtype)


def prepare_params(params):
    """Pad weights to lane-dense widths and cast matmul operands to bf16.

    Run ONCE outside the step loop; dqn_forward then does no per-call padding.
    """
    w1, b1 = params["w1"], params["b1"]
    w2, b2 = params["w2"], params["b2"]
    w3, b3 = params["w3"], params["b3"]
    hidden = w1.shape[1]
    n_actions = w3.shape[1]
    n_out = _round_up(n_actions, _LANE)
    pad_h = _HID - hidden
    return {
        "w1": jnp.pad(w1, ((0, 0), (0, pad_h))).astype(jnp.bfloat16),
        "b1": jnp.pad(b1, ((0, 0), (0, pad_h))).astype(jnp.float32),
        "w2": jnp.pad(w2, ((0, pad_h), (0, pad_h))).astype(jnp.bfloat16),
        "b2": jnp.pad(b2, ((0, 0), (0, pad_h))).astype(jnp.float32),
        "w3": jnp.pad(w3, ((0, pad_h), (0, n_out - n_actions))).astype(jnp.bfloat16),
        "b3": jnp.pad(b3, ((0, 0), (0, n_out - n_actions))).astype(jnp.float32),
    }


@functools.partial(jax.jit, static_argnames=("n_actions",))
def dqn_forward(x, padded_params, n_actions):
    """x: (B, n_states) f32.  padded_params: output of prepare_params."""
    w1, b1 = padded_params["w1"], padded_params["b1"]
    w2, b2 = padded_params["w2"], padded_params["b2"]
    w3, b3 = padded_params["w3"], padded_params["b3"]

    B, n_states = x.shape
    n_out = w3.shape[1]

    # ---- batch tiling ------------------------------------------------------
    B8 = _round_up(B, 8)
    if B8 <= 256:
        grid_n = 1                                  # tiny batch: launch bound
    else:
        # keep >= 2 grid steps so the "parallel" axis feeds both v7x TCs,
        # and cap the tile at _MAX_TILE rows.
        grid_n = max(2, pl.cdiv(B8, _MAX_TILE))
    TB = _round_up(pl.cdiv(B8, grid_n), 8)
    B_pad = TB * grid_n                             # wastes <= ~8*grid_n rows

    x_pad = x if B_pad == B else jnp.pad(x, ((0, B_pad - B), (0, 0)))

    n_sub = _pick_n_sub(TB)
    resident = lambda i: (0, 0)                     # weights: same block per tile

    out = pl.pallas_call(
        functools.partial(dqn_kernel, n_sub=n_sub),
        out_shape=jax.ShapeDtypeStruct((B_pad, n_out), jnp.float32),
        grid=(grid_n,),
        in_specs=[
            pl.BlockSpec((TB, n_states), lambda i: (i, 0)),   # x tile (streamed)
            pl.BlockSpec((n_states, _HID), resident),         # w1 (bf16)
            pl.BlockSpec((1, _HID), resident),                # b1
            pl.BlockSpec((_HID, _HID), resident),             # w2 (bf16)
            pl.BlockSpec((1, _HID), resident),                # b2
            pl.BlockSpec((_HID, n_out), resident),            # w3 (bf16)
            pl.BlockSpec((1, n_out), resident),               # b3
        ],
        out_specs=pl.BlockSpec((TB, n_out), lambda i: (i, 0)),
        compiler_params=pltpu.CompilerParams(
            dimension_semantics=("parallel",),   # shard batch tiles across TCs
        ),
    )(x_pad, w1, b1, w2, b2, w3, b3)

    # TODO(synk): for very large B on v5e, store a transposed / bf16 output
    # slab to cut the 64x-padded (n_actions -> 128 lane) writeback.
    return out[:B, :n_actions]


def init_params(key, n_states, n_actions, hidden=64):
    """Deterministic init mimicking nn.Linear default (uniform +/- 1/sqrt(fan_in))."""
    ks = jax.random.split(key, 6)

    def linear(kw, kb, fan_in, fan_out):
        bound = 1.0 / jnp.sqrt(jnp.float32(fan_in))
        w = jax.random.uniform(kw, (fan_in, fan_out), jnp.float32, -bound, bound)
        b = jax.random.uniform(kb, (1, fan_out), jnp.float32, -bound, bound)
        return w, b

    w1, b1 = linear(ks[0], ks[1], n_states, hidden)
    w2, b2 = linear(ks[2], ks[3], hidden, hidden)
    w3, b3 = linear(ks[4], ks[5], hidden, n_actions)
    return {"w1": w1, "b1": b1, "w2": w2, "b2": b2, "w3": w3, "b3": b3}


def dqn_reference(x, params):
    h1 = jnp.tanh(x @ params["w1"] + params["b1"])
    h2 = jnp.tanh(h1 @ params["w2"] + params["b2"])
    return h2 @ params["w3"] + params["b3"]


if __name__ == "__main__":
    key = jax.random.PRNGKey(0)
    k_params, k_x, k_x2 = jax.random.split(key, 3)

    n_states = 4      # e.g. CartPole observation dim
    n_actions = 2     # e.g. CartPole action dim

    params = init_params(k_params, n_states, n_actions, hidden=64)
    padded = prepare_params(params)   # pad + bf16-cast ONCE, outside the step loop

    # --- small batch (single tile, launch-bound path) -----------------------
    batch = 8
    x = jax.random.normal(k_x, (batch, n_states), jnp.float32)
    out = jax.block_until_ready(dqn_forward(x, padded, n_actions))
    ref = dqn_reference(x, params)
    assert out.shape == (batch, n_actions)
    # bf16 matmul operands -> relaxed tolerance vs the f32 reference
    assert jnp.allclose(out, ref, atol=2e-2, rtol=2e-2)

    # --- larger batch (exercises grid >= 2 + ragged padding path) -----------
    batch2 = 300
    x2 = jax.random.normal(k_x2, (batch2, n_states), jnp.float32)
    out2 = jax.block_until_ready(dqn_forward(x2, padded, n_actions))
    ref2 = dqn_reference(x2, params)
    assert out2.shape == (batch2, n_actions)
    assert jnp.allclose(out2, ref2, atol=2e-2, rtol=2e-2)

    print("KERNEL_OK")
</pallas_src>

<mosaic_0001>
module attributes {stable_mosaic.version = 11 : i64} {
  func.func @dqn_kernel(%arg0: i32, %arg1: memref<8x4xf32, #tpu.memory_space<vmem>>, %arg2: memref<4x128xbf16, #tpu.memory_space<vmem>>, %arg3: memref<1x128xf32, #tpu.memory_space<vmem>>, %arg4: memref<128x128xbf16, #tpu.memory_space<vmem>>, %arg5: memref<1x128xf32, #tpu.memory_space<vmem>>, %arg6: memref<128x128xbf16, #tpu.memory_space<vmem>>, %arg7: memref<1x128xf32, #tpu.memory_space<vmem>>, %arg8: memref<8x128xf32, #tpu.memory_space<vmem>>) attributes {dimension_semantics = [#tpu.dimension_semantics<parallel>], iteration_bounds = array<i64: 1>, scalar_prefetch = 0 : i64, scratch_operands = 0 : i64, tpu.core_type = #tpu.core_type<tc>, window_params = [{transform_indices = @transform_0, window_bounds = array<i64: 8, 4>}, {pipeline_mode = #tpu.pipeline_mode<synchronous>, transform_indices = @transform_1, window_bounds = array<i64: 4, 128>}, {pipeline_mode = #tpu.pipeline_mode<synchronous>, transform_indices = @transform_2, window_bounds = array<i64: 1, 128>}, {pipeline_mode = #tpu.pipeline_mode<synchronous>, transform_indices = @transform_3, window_bounds = array<i64: 128, 128>}, {pipeline_mode = #tpu.pipeline_mode<synchronous>, transform_indices = @transform_4, window_bounds = array<i64: 1, 128>}, {pipeline_mode = #tpu.pipeline_mode<synchronous>, transform_indices = @transform_5, window_bounds = array<i64: 128, 128>}, {pipeline_mode = #tpu.pipeline_mode<synchronous>, transform_indices = @transform_6, window_bounds = array<i64: 1, 128>}, {transform_indices = @transform_7, window_bounds = array<i64: 8, 128>}]} {
    %c0 = arith.constant 0 : index
    %c0_0 = arith.constant 0 : index
    %0 = vector.load %arg2[%c0, %c0_0] : memref<4x128xbf16, #tpu.memory_space<vmem>>, vector<4x128xbf16>
    %c0_1 = arith.constant 0 : index
    %c0_2 = arith.constant 0 : index
    %1 = vector.load %arg4[%c0_1, %c0_2] : memref<128x128xbf16, #tpu.memory_space<vmem>>, vector<128x128xbf16>
    %c0_3 = arith.constant 0 : index
    %c0_4 = arith.constant 0 : index
    %2 = vector.load %arg6[%c0_3, %c0_4] : memref<128x128xbf16, #tpu.memory_space<vmem>>, vector<128x128xbf16>
    %c0_5 = arith.constant 0 : index
    %c0_6 = arith.constant 0 : index
    %3 = vector.load %arg3[%c0_5, %c0_6] : memref<1x128xf32, #tpu.memory_space<vmem>>, vector<1x128xf32>
    %4 = vector.shape_cast %3 : vector<1x128xf32> to vector<1x128xf32>
    %5 = vector.broadcast %4 : vector<1x128xf32> to vector<8x128xf32>
    %c0_7 = arith.constant 0 : index
    %c0_8 = arith.constant 0 : index
    %6 = vector.load %arg5[%c0_7, %c0_8] : memref<1x128xf32, #tpu.memory_space<vmem>>, vector<1x128xf32>
    %7 = vector.shape_cast %6 : vector<1x128xf32> to vector<1x128xf32>
    %8 = vector.broadcast %7 : vector<1x128xf32> to vector<8x128xf32>
    %c0_9 = arith.constant 0 : index
    %c0_10 = arith.constant 0 : index
    %9 = vector.load %arg7[%c0_9, %c0_10] : memref<1x128xf32, #tpu.memory_space<vmem>>, vector<1x128xf32>
    %10 = vector.shape_cast %9 : vector<1x128xf32> to vector<1x128xf32>
    %11 = vector.broadcast %10 : vector<1x128xf32> to vector<8x128xf32>
    %c0_11 = arith.constant 0 : index
    %c0_12 = arith.constant 0 : index
    %12 = vector.load %arg1[%c0_11, %c0_12] : memref<8x4xf32, #tpu.memory_space<vmem>>, vector<8x4xf32>
    %13 = arith.truncf %12 : vector<8x4xf32> to vector<8x4xbf16>
    %cst = arith.constant dense<0.000000e+00> : vector<8x128xf32>
    %14 = tpu.matmul %13, %0, %cst {dimension_numbers = #tpu.dot_dimension_numbers<[1], [0], [0], [1], [0, 0, 1, 1], [], []>} : vector<8x4xbf16>, vector<4x128xbf16>, vector<8x128xf32> -> vector<8x128xf32>
    %15 = arith.addf %14, %5 : vector<8x128xf32>
    %16 = math.tanh %15 : vector<8x128xf32>
    %17 = arith.truncf %16 : vector<8x128xf32> to vector<8x128xbf16>
    %cst_13 = arith.constant dense<0.000000e+00> : vector<8x128xf32>
    %18 = tpu.matmul %17, %1, %cst_13 {dimension_numbers = #tpu.dot_dimension_numbers<[1], [0], [0], [1], [0, 0, 1, 1], [], []>} : vector<8x128xbf16>, vector<128x128xbf16>, vector<8x128xf32> -> vector<8x128xf32>
    %19 = arith.addf %18, %8 : vector<8x128xf32>
    %20 = math.tanh %19 : vector<8x128xf32>
    %21 = arith.truncf %20 : vector<8x128xf32> to vector<8x128xbf16>
    %cst_14 = arith.constant dense<0.000000e+00> : vector<8x128xf32>
    %22 = tpu.matmul %21, %2, %cst_14 {dimension_numbers = #tpu.dot_dimension_numbers<[1], [0], [0], [1], [0, 0, 1, 1], [], []>} : vector<8x128xbf16>, vector<128x128xbf16>, vector<8x128xf32> -> vector<8x128xf32>
    %23 = arith.addf %22, %11 : vector<8x128xf32>
    %c0_15 = arith.constant 0 : index
    %c0_16 = arith.constant 0 : index
    %24 = vector.load %arg8[%c0_15, %c0_16] : memref<8x128xf32, #tpu.memory_space<vmem>>, vector<8x128xf32>
    tpu.vector_store %arg8[%c0_15, %c0_16], %23 {strides = array<i32>} : memref<8x128xf32, #tpu.memory_space<vmem>>, vector<8x128xf32>,
    return
  }
  func.func @transform_0(%arg0: i32) -> (i32, i32) {
    %c0_i32 = arith.constant 0 : i32
    %c0_i32_0 = arith.constant 0 : i32
    return %arg0, %c0_i32 : i32, i32
  }
  func.func @transform_1(%arg0: i32) -> (i32, i32) {
    %c0_i32 = arith.constant 0 : i32
    %c0_i32_0 = arith.constant 0 : i32
    %c0_i32_1 = arith.constant 0 : i32
    return %c0_i32, %c0_i32_0 : i32, i32
  }
  func.func @transform_2(%arg0: i32) -> (i32, i32) {
    %c0_i32 = arith.constant 0 : i32
    %c0_i32_0 = arith.constant 0 : i32
    %c0_i32_1 = arith.constant 0 : i32
    return %c0_i32, %c0_i32_0 : i32, i32
  }
  func.func @transform_3(%arg0: i32) -> (i32, i32) {
    %c0_i32 = arith.constant 0 : i32
    %c0_i32_0 = arith.constant 0 : i32
    %c0_i32_1 = arith.constant 0 : i32
    return %c0_i32, %c0_i32_0 : i32, i32
  }
  func.func @transform_4(%arg0: i32) -> (i32, i32) {
    %c0_i32 = arith.constant 0 : i32
    %c0_i32_0 = arith.constant 0 : i32
    %c0_i32_1 = arith.constant 0 : i32
    return %c0_i32, %c0_i32_0 : i32, i32
  }
  func.func @transform_5(%arg0: i32) -> (i32, i32) {
    %c0_i32 = arith.constant 0 : i32
    %c0_i32_0 = arith.constant 0 : i32
    %c0_i32_1 = arith.constant 0 : i32
    return %c0_i32, %c0_i32_0 : i32, i32
  }
  func.func @transform_6(%arg0: i32) -> (i32, i32) {
    %c0_i32 = arith.constant 0 : i32
    %c0_i32_0 = arith.constant 0 : i32
    %c0_i32_1 = arith.constant 0 : i32
    return %c0_i32, %c0_i32_0 : i32, i32
  }
  func.func @transform_7(%arg0: i32) -> (i32, i32) {
    %c0_i32 = arith.constant 0 : i32
    %c0_i32_0 = arith.constant 0 : i32
    return %arg0, %c0_i32 : i32, i32
  }
}

</mosaic_0001>

<llo_original>
// kernel: dqn_forward.1
$region0: #{dqn_forward.1}
  #allocation0 [shape = 'u32[]', space=smem, size = 0x4, offset = 0x4, fixed_abs, tag = 'smem constant byte address 0x4 - core index']
  #allocation1 [shape = 'u32[72,128]{1,0:T(1,128)}', space=vmem, size = 0x9000, scoped, tag = 'internal scratch']
  %s0 = inlined_call_operand.vmem [shape: f32[8,4], index: 0, kind: input, shape index: {}]
  %s1 = inlined_call_operand.vmem [shape: bf16[4,128], index: 1, kind: input, shape index: {}]
  %s2 = inlined_call_operand.vmem [shape: f32[1,128], index: 2, kind: input, shape index: {}]
  %s3 = inlined_call_operand.hbm [shape: bf16[128,128], index: 3, kind: input, shape index: {}]
  %s4 = inlined_call_operand.vmem [shape: f32[1,128], index: 4, kind: input, shape index: {}]
  %s5 = inlined_call_operand.hbm [shape: bf16[128,128], index: 5, kind: input, shape index: {}]
  %s6 = inlined_call_operand.vmem [shape: f32[1,128], index: 6, kind: input, shape index: {}]
  %s7 = inlined_call_operand.vmem [shape: f32[8,128], index: 7, kind: output, shape index: {}]
  %s8 = sld [smem:[#allocation0]]
  $region46: #{dqn_forward.1} parent=0
    _
  %s10 = ssub.s32 1, %s8
  %s11 = scalar_select 0, %s10, %s8
  $region1: #{dqn_forward.1} parent=0
    #allocation2 [shape = 'u8[32768]{0}', space=vmem, size = 0x8000, scoped, tag = 'input window, operand 3, single buffered']
    #allocation3 [shape = 's32[1]{0}', space=sflag, size = 0x4, scoped, tag = 'scoped memory for dqn_forward.1']
    #allocation4 [shape = 'u8[32768]{0}', space=vmem, size = 0x8000, scoped, tag = 'input window, operand 5, single buffered']
    #allocation5 [shape = 's32[1]{0}', space=sflag, size = 0x4, scoped, tag = 'scoped memory for dqn_forward.1']
    %12 = vsyncpa [#allocation3], 0
    %13 = vsyncpa [#allocation5], 0
    // Predicated region
    $region2: #{dqn_forward.1} parent=1 // pred_check
      _
    $region3: #{dqn_forward.1} parent=1 // pred_check_branch
      %15 = sbr.rel (0) target = $region5
    $region4: #{dqn_forward.1} parent=1 // pred_region
      _
    $region5: #{dqn_forward.1} parent=1 // pred_fallthru
      _
    // Predicated region
    $region6: #{dqn_forward.1} parent=1 // pred_check
      _
    $region7: #{dqn_forward.1} parent=1 // pred_check_branch
      %17 = sbr.rel (0) target = $region9
    $region8: #{dqn_forward.1} parent=1 // pred_region
      _
    $region9: #{dqn_forward.1} parent=1 // pred_fallthru
      _
    // Predicated region
    $region10: #{dqn_forward.1} parent=1 // pred_check
      _
    $region11: #{dqn_forward.1} parent=1 // pred_check_branch
      %19 = sbr.rel (0) target = $region13
    $region12: #{dqn_forward.1} parent=1 // pred_region
      _
    $region13: #{dqn_forward.1} parent=1 // pred_fallthru
      _
    // Predicated region
    $region14: #{dqn_forward.1} parent=1 // pred_check
      _
    $region15: #{dqn_forward.1} parent=1 // pred_check_branch
      %21 = sbr.rel (0) target = $region17
    $region16: #{dqn_forward.1} parent=1 // pred_region
      %23 = vsyncadd [#allocation3], 0
      %s24 = sshll.u32 %s3, 4
      %s25 = int_to_ptr.hbm [resolvable:$true] %s24
      %s26 = sshll.u32 [#allocation2], 4
      %s27 = int_to_ptr.vmem [resolvable:$true] %s26
      %32 = dma.hbm_to_vmem [thread:$0]  %s25, 1024, %s27, [#allocation3], 64, 64, 4
    $region17: #{dqn_forward.1} parent=1 // pred_fallthru
      _
    // Predicated region
    $region18: #{dqn_forward.1} parent=1 // pred_check
      _
    $region19: #{dqn_forward.1} parent=1 // pred_check_branch
      %34 = sbr.rel (0) target = $region21
    $region20: #{dqn_forward.1} parent=1 // pred_region
      _
    $region21: #{dqn_forward.1} parent=1 // pred_fallthru
      _
    // Predicated region
    $region22: #{dqn_forward.1} parent=1 // pred_check
      _
    $region23: #{dqn_forward.1} parent=1 // pred_check_branch
      %36 = sbr.rel (0) target = $region25
    $region24: #{dqn_forward.1} parent=1 // pred_region
      %38 = vsyncadd [#allocation5], 0
      %s39 = sshll.u32 %s5, 4
      %s40 = int_to_ptr.hbm [resolvable:$true] %s39
      %s41 = sshll.u32 [#allocation4], 4
      %s42 = int_to_ptr.vmem [resolvable:$true] %s41
      %47 = dma.hbm_to_vmem [thread:$0]  %s40, 1024, %s42, [#allocation5], 64, 64, 4
    $region25: #{dqn_forward.1} parent=1 // pred_fallthru
      _
    // Predicated region
    $region26: #{dqn_forward.1} parent=1 // pred_check
      _
    $region27: #{dqn_forward.1} parent=1 // pred_check_branch
      %49 = sbr.rel (0) target = $region29
    $region28: #{dqn_forward.1} parent=1 // pred_region
      _
    $region29: #{dqn_forward.1} parent=1 // pred_fallthru
      _
    // Predicated region
    $region30: #{dqn_forward.1} parent=1 // pred_check
      _
    $region31: #{dqn_forward.1} parent=1 // pred_check_branch
      %51 = sbr.rel (0) target = $region33
    $region32: #{dqn_forward.1} parent=1 // pred_region
      %53 = dma.done [#allocation3], 1024
    $region33: #{dqn_forward.1} parent=1 // pred_fallthru
      _
    // Predicated region
    $region34: #{dqn_forward.1} parent=1 // pred_check
      _
    $region35: #{dqn_forward.1} parent=1 // pred_check_branch
      %55 = sbr.rel (0) target = $region37
    $region36: #{dqn_forward.1} parent=1 // pred_region
      %57 = dma.done [#allocation5], 1024
    $region37: #{dqn_forward.1} parent=1 // pred_fallthru
      _
    %v59 = vld [vmem:[%s1] sm:$0x3]
    %v60 = vld [vmem:[#allocation2] sm:$0xf]
    %v61 = vld [vmem:[#allocation2 + $0x4] sm:$0xf]
    %v62 = vld [vmem:[#allocation2 + $0x8] sm:$0xf]
    %v63 = vld [vmem:[#allocation2 + $0xc] sm:$0xf]
    %v64 = vld [vmem:[#allocation2 + $0x10] sm:$0xf]
    %v65 = vld [vmem:[#allocation2 + $0x14] sm:$0xf]
    %v66 = vld [vmem:[#allocation2 + $0x18] sm:$0xf]
    %v67 = vld [vmem:[#allocation2 + $0x1c] sm:$0xf]
    %v68 = vld [vmem:[#allocation2 + $0x20] sm:$0xf]
    %v69 = vld [vmem:[#allocation2 + $0x24] sm:$0xf]
    %v70 = vld [vmem:[#allocation2 + $0x28] sm:$0xf]
    %v71 = vld [vmem:[#allocation2 + $0x2c] sm:$0xf]
    %v72 = vld [vmem:[#allocation2 + $0x30] sm:$0xf]
    %v73 = vld [vmem:[#allocation2 + $0x34] sm:$0xf]
    %v74 = vld [vmem:[#allocation2 + $0x38] sm:$0xf]
    %v75 = vld [vmem:[#allocation2 + $0x3c] sm:$0xf]
    %v76 = vld [vmem:[#allocation4] sm:$0xf]
    %v77 = vld [vmem:[#allocation4 + $0x4] sm:$0xf]
    %v78 = vld [vmem:[#allocation4 + $0x8] sm:$0xf]
    %v79 = vld [vmem:[#allocation4 + $0xc] sm:$0xf]
    %v80 = vld [vmem:[#allocation4 + $0x10] sm:$0xf]
    %v81 = vld [vmem:[#allocation4 + $0x14] sm:$0xf]
    %v82 = vld [vmem:[#allocation4 + $0x18] sm:$0xf]
    %v83 = vld [vmem:[#allocation4 + $0x1c] sm:$0xf]
    %v84 = vld [vmem:[#allocation4 + $0x20] sm:$0xf]
    %v85 = vld [vmem:[#allocation4 + $0x24] sm:$0xf]
    %v86 = vld [vmem:[#allocation4 + $0x28] sm:$0xf]
    %v87 = vld [vmem:[#allocation4 + $0x2c] sm:$0xf]
    %v88 = vld [vmem:[#allocation4 + $0x30] sm:$0xf]
    %v89 = vld [vmem:[#allocation4 + $0x34] sm:$0xf]
    %v90 = vld [vmem:[#allocation4 + $0x38] sm:$0xf]
    %v91 = vld [vmem:[#allocation4 + $0x3c] sm:$0xf]
    %v92 = vld [vmem:[%s2] sm:$0x1]
    %v94 = vperm.slane %v92, 0
    %v96 = vld [vmem:[%s4] sm:$0x1]
    %v98 = vperm.slane %v96, 0
    %v100 = vld [vmem:[%s6] sm:$0x1]
    %v102 = vperm.slane %v100, 0
    %v104 = vld [vmem:[%s0] sm:$0xff]
    %v105 = vpack.c.bf16 %v104, %v104
    %vm106 = vcmask 31744
    %v108 = vsel %vm106, %v105, 0
    %vm110 = vcmask 1041408
    %v112 = vsel %vm110, %v59, 0
    %114 = vmatpush.bf16.msra.mxu0 0
    %115 = vmatpush.bf16.msra.mxu0 0
    %116 = vmatpush.bf16.msra.mxu0 0
    %117 = vmatpush.bf16.msra.mxu0 0
    %118 = vmatpush.bf16.msra.mxu0 0
    %119 = vmatpush.bf16.msra.mxu0 0
    %120 = vmatpush.bf16.msra.mxu0 0
    %121 = vmatpush.bf16.msra.mxu0 %v112
    %122 = vmatmul.bf16.gmra.mxu0 %v108
    %v123 = vpop.f32.mrf.mxu0
    %v124 = vadd.f32 %v94, %v123
    %v125 = vpop.f32.mrf.mxu0
    %126 = vdwg.mxu0
    %v127 = vtanh.pop %v124
    %v128 = vpack.c.bf16 %v127, %v127
    %v145 = vunpack.c.l.b16 %v60
    %v146 = vunpack.c.l.b16 %v61
    %v147 = vunpack.c.l.b16 %v62
    %v148 = vunpack.c.l.b16 %v63
    %v149 = vunpack.c.l.b16 %v64
    %v150 = vunpack.c.l.b16 %v65
    %v151 = vunpack.c.l.b16 %v66
    %v152 = vunpack.c.l.b16 %v67
    %v153 = vunpack.c.l.b16 %v68
    %v154 = vunpack.c.l.b16 %v69
    %v155 = vunpack.c.l.b16 %v70
    %v156 = vunpack.c.l.b16 %v71
    %v157 = vunpack.c.l.b16 %v72
    %v158 = vunpack.c.l.b16 %v73
    %v159 = vunpack.c.l.b16 %v74
    %v160 = vunpack.c.l.b16 %v75
    %v161 = vpack.c.b16 %v146, %v145
    %v162 = vpack.c.b16 %v148, %v147
    %v163 = vpack.c.b16 %v150, %v149
    %v164 = vpack.c.b16 %v152, %v151
    %v165 = vpack.c.b16 %v154, %v153
    %v166 = vpack.c.b16 %v156, %v155
    %v167 = vpack.c.b16 %v158, %v157
    %v168 = vpack.c.b16 %v160, %v159
    %177 = vmatpush.bf16.msra.mxu0 %v168
    %178 = vmatpush.bf16.msra.mxu0 %v167
    %179 = vmatpush.bf16.msra.mxu0 %v166
    %180 = vmatpush.bf16.msra.mxu0 %v165
    %181 = vmatpush.bf16.msra.mxu0 %v164
    %182 = vmatpush.bf16.msra.mxu0 %v163
    %183 = vmatpush.bf16.msra.mxu0 %v162
    %184 = vmatpush.bf16.msra.mxu0 %v161
    %185 = vmatmul.bf16.gmra.mxu0 %v128
    %v186 = vpop.f32.mrf.mxu0
    %v187 = vadd.f32 %v98, %v186
    %v188 = vpop.f32.mrf.mxu0
    %189 = vdwg.mxu0
    %v190 = vtanh.pop %v187
    %v191 = vpack.c.bf16 %v190, %v190
    %v208 = vunpack.c.l.b16 %v76
    %v209 = vunpack.c.l.b16 %v77
    %v210 = vunpack.c.l.b16 %v78
    %v211 = vunpack.c.l.b16 %v79
    %v212 = vunpack.c.l.b16 %v80
    %v213 = vunpack.c.l.b16 %v81
    %v214 = vunpack.c.l.b16 %v82
    %v215 = vunpack.c.l.b16 %v83
    %v216 = vunpack.c.l.b16 %v84
    %v217 = vunpack.c.l.b16 %v85
    %v218 = vunpack.c.l.b16 %v86
    %v219 = vunpack.c.l.b16 %v87
    %v220 = vunpack.c.l.b16 %v88
    %v221 = vunpack.c.l.b16 %v89
    %v222 = vunpack.c.l.b16 %v90
    %v223 = vunpack.c.l.b16 %v91
    %v224 = vpack.c.b16 %v209, %v208
    %v225 = vpack.c.b16 %v211, %v210
    %v226 = vpack.c.b16 %v213, %v212
    %v227 = vpack.c.b16 %v215, %v214
    %v228 = vpack.c.b16 %v217, %v216
    %v229 = vpack.c.b16 %v219, %v218
    %v230 = vpack.c.b16 %v221, %v220
    %v231 = vpack.c.b16 %v223, %v222
    %240 = vmatpush.bf16.msra.mxu0 %v231
    %241 = vmatpush.bf16.msra.mxu0 %v230
    %242 = vmatpush.bf16.msra.mxu0 %v229
    %243 = vmatpush.bf16.msra.mxu0 %v228
    %244 = vmatpush.bf16.msra.mxu0 %v227
    %245 = vmatpush.bf16.msra.mxu0 %v226
    %246 = vmatpush.bf16.msra.mxu0 %v225
    %247 = vmatpush.bf16.msra.mxu0 %v224
    %248 = vmatmul.bf16.gmra.mxu0 %v191
    %v249 = vpop.f32.mrf.mxu0
    %v250 = vadd.f32 %v102, %v249
    %v251 = vpop.f32.mrf.mxu0
    %252 = vdwg.mxu0
    %253 = vst [vmem:[%s7] sm:$0xff] %v250
    // Predicated region
    $region38: #{dqn_forward.1} parent=1 // pred_check
      _
    $region39: #{dqn_forward.1} parent=1 // pred_check_branch
      %255 = sbr.rel (0) target = $region41
    $region40: #{dqn_forward.1} parent=1 // pred_region
      _
    $region41: #{dqn_forward.1} parent=1 // pred_fallthru
      _
    // Predicated region
    $region42: #{dqn_forward.1} parent=1 // pred_check
      _
    $region43: #{dqn_forward.1} parent=1 // pred_check_branch
      %257 = sbr.rel (0) target = $region45
    $region44: #{dqn_forward.1} parent=1 // pred_region
      _
    $region45: #{dqn_forward.1} parent=1 // pred_fallthru
      _
    %258 = vsyncpa [#allocation3], 1
    %259 = vsyncpa [#allocation5], 1

</llo_original>
